<compile_context>
chip_gen: v5e
topology: v5e:2x2
jax: 0.10.0
libtpu: 0.0.40
codegen_flags: <defaults>
</compile_context>

<pallas_src>
import jax
import jax.numpy as jnp
from jax.experimental import pallas as pl
from jax.experimental.pallas import tpu as pltpu


def _transup_kernel(x_ref, w_ref, b_ref, o_ref):
    # x_ref: (1, 1, TA+1, WB+1, Cin)   padded-input row tile (1-row/col halo)
    # w_ref: (4*Cin, 4*Cout)           combined phase/tap weights
    # b_ref: (1, 4*Cout)               bias tiled over the 4 phases
    # o_ref: (1, 1, TA*WB, 4*Cout)     phase-packed output tile
    ta = x_ref.shape[2] - 1
    wb = x_ref.shape[3] - 1
    cin = x_ref.shape[4]

    xt = x_ref[0, 0]  # (TA+1, WB+1, Cin)

    # im2col of the 2x2 top-left neighborhoods -> (TA*WB, 4*Cin), tap order q = 2*dh+dw
    p = jnp.concatenate(
        [
            xt[0:ta, 0:wb, :],          # q=0 : x[a-1, b-1]
            xt[0:ta, 1:wb + 1, :],      # q=1 : x[a-1, b  ]
            xt[1:ta + 1, 0:wb, :],      # q=2 : x[a  , b-1]
            xt[1:ta + 1, 1:wb + 1, :],  # q=3 : x[a  , b  ]
        ],
        axis=-1,
    ).reshape(ta * wb, 4 * cin)

    acc = jnp.dot(p, w_ref[...], preferred_element_type=jnp.float32)
    acc = acc + b_ref[...].astype(jnp.float32)  # (1, 4*Cout) broadcasts
    o_ref[0, 0] = acc.astype(o_ref.dtype)


def _phase_weights(w_t, bias):
    """ConvTranspose2d weight (Cin, Cout, 3, 3) -> combined (4*Cin, 4*Cout) matrix.

    Row block q = 2*dh + dw corresponds to input x[a-1+dh, b-1+dw]; column block
    phase = 2*pr + pc corresponds to output pixel (2a+pr, 2b+pc).
    """
    cin, cout = w_t.shape[0], w_t.shape[1]
    rows = []
    for dh in range(2):
        for dw in range(2):
            cols = []
            for pr in range(2):
                for pc in range(2):
                    kh = pr + 2 - 2 * dh
                    kw = pc + 2 - 2 * dw
                    if kh <= 2 and kw <= 2:
                        cols.append(w_t[:, :, kh, kw])
                    else:
                        cols.append(jnp.zeros((cin, cout), w_t.dtype))
            rows.append(jnp.concatenate(cols, axis=1))      # (Cin, 4*Cout)
    wc = jnp.concatenate(rows, axis=0)                       # (4*Cin, 4*Cout)
    b4 = jnp.tile(bias, 4).reshape(1, 4 * cout)              # (1, 4*Cout)
    return wc, b4


def _row_tile(ha, n, row_bytes, budget=8 << 20, min_steps=4):
    """Pick output-row-block size TA: bounded VMEM, and a few grid steps for the
    pipeline / v7x megacore even when the batch is tiny."""
    ta = max(1, min(ha, budget // max(row_bytes, 1)))
    want_nt = -(-min_steps // max(n, 1))  # ceil
    if want_nt > 1:
        ta = min(ta, max(1, -(-ha // want_nt)))
    return int(ta)


def transition_up_forward(x_nchw, skip_nchw, w_t, bias):
    """TransitionUp.forward for scale=2.

    x_nchw:    (N, Cin, H, W)
    skip_nchw: (N, Cs, Hs, Ws)   with Hs <= 2H+1, Ws <= 2W+1
    w_t:       (Cin, Cout, 3, 3) PyTorch ConvTranspose2d weight layout
    bias:      (Cout,)
    returns    (N, Cout + Cs, Hs, Ws) in NCHW, like the PyTorch module.
    """
    n, cin, h, w = x_nchw.shape
    cout = w_t.shape[1]
    th, tw = skip_nchw.shape[2], skip_nchw.shape[3]
    oh, ow = 2 * h + 1, 2 * w + 1
    oy0, ox0 = (oh - th) // 2, (ow - tw) // 2        # center-crop offsets

    # Which (a, b) output 2x2 blocks are needed to cover the cropped region.
    a0, b0 = oy0 // 2, ox0 // 2
    ha = (oy0 + th - 1) // 2 - a0 + 1
    wb = (ox0 + tw - 1) // 2 - b0 + 1

    # NCHW -> NHWC (channels on lanes), pad by 1 so every 2x2 neighborhood is in-bounds,
    # and keep only the rows/cols feeding the cropped output (crop fused into compute).
    x = jnp.transpose(x_nchw, (0, 2, 3, 1))
    xp = jnp.pad(x, ((0, 0), (1, 1), (1, 1), (0, 0)))
    xwin = xp[:, a0:a0 + ha + 1, b0:b0 + wb + 1, :]          # (n, ha+1, wb+1, cin)

    # Row tiling (spatial grid axis).
    elt = jnp.dtype(x.dtype).itemsize
    row_bytes = 2 * ((wb + 1) * cin * elt + wb * 4 * cout * 4)   # double-buffered in+out
    ta = _row_tile(ha, n, row_bytes)
    nt = -(-ha // ta)
    ha_pad = nt * ta
    if ha_pad > ha:
        xwin = jnp.pad(xwin, ((0, 0), (0, ha_pad - ha), (0, 0), (0, 0)))
    # Pre-gather the 1-row halo per tile -> simple non-overlapping BlockSpecs.
    xtiles = jnp.stack([xwin[:, t * ta:t * ta + ta + 1] for t in range(nt)], axis=1)
    # (n, nt, ta+1, wb+1, cin)

    wc, b4 = _phase_weights(w_t, bias)

    y = pl.pallas_call(
        _transup_kernel,
        out_shape=jax.ShapeDtypeStruct((n, nt, ta * wb, 4 * cout), x.dtype),
        grid=(n, nt),
        in_specs=[
            pl.BlockSpec((1, 1, ta + 1, wb + 1, cin), lambda i, j: (i, j, 0, 0, 0)),
            pl.BlockSpec((4 * cin, 4 * cout), lambda i, j: (0, 0)),
            pl.BlockSpec((1, 4 * cout), lambda i, j: (0, 0)),
        ],
        out_specs=pl.BlockSpec((1, 1, ta * wb, 4 * cout), lambda i, j: (i, j, 0, 0)),
        compiler_params=pltpu.CompilerParams(
            dimension_semantics=("parallel", "parallel"),
            vmem_limit_bytes=32 * 1024 * 1024,
        ),
    )(xtiles, wc, b4)

    # Pixel-shuffle + NHWC->NCHW + exact center-crop in one XLA transpose/slice pass.
    y = y.reshape(n, ha_pad, wb, 2, 2, cout)                  # (n, a, b, pr, pc, d)
    y = jnp.transpose(y, (0, 5, 1, 3, 2, 4)).reshape(n, cout, 2 * ha_pad, 2 * wb)
    r0, c0 = oy0 - 2 * a0, ox0 - 2 * b0
    y = y[:, :, r0:r0 + th, c0:c0 + tw]
    return jnp.concatenate([y, skip_nchw], axis=1)


def reference_forward(x, skip, w_t, bias):
    """Plain-JAX reference using the scatter definition of ConvTranspose2d (NCHW)."""
    n, cin, h, w = x.shape
    cout = w_t.shape[1]
    oh, ow = 2 * h + 1, 2 * w + 1
    out = jnp.zeros((n, cout, oh, ow), jnp.float32)
    for kh in range(3):
        for kw in range(3):
            contrib = jnp.einsum(
                "nchw,cd->ndhw", x, w_t[:, :, kh, kw],
                precision=jax.lax.Precision.HIGHEST,
            )
            out = out.at[:, :, kh:kh + 2 * h - 1:2, kw:kw + 2 * w - 1:2].add(contrib)
    out = out + bias[None, :, None, None]
    th, tw = skip.shape[2], skip.shape[3]
    oy, ox = (oh - th) // 2, (ow - tw) // 2
    out = out[:, :, oy:oy + th, ox:ox + tw]
    return jnp.concatenate([out, skip], axis=1)


if __name__ == "__main__":
    key = jax.random.PRNGKey(0)
    k_x, k_s, k_w, k_b = jax.random.split(key, 4)

    N, CIN, COUT, CSKIP, H, W = 2, 4, 5, 3, 16, 16
    x = jax.random.normal(k_x, (N, CIN, H, W), jnp.float32)
    # deterministic synthetic parameters (PyTorch ConvTranspose2d weight layout)
    w_t = jax.random.normal(k_w, (CIN, COUT, 3, 3), jnp.float32) * 0.1
    bias = jax.random.normal(k_b, (COUT,), jnp.float32) * 0.1

    # Case 1: skip exactly 2x spatial (typical encoder/decoder pairing)
    skip = jax.random.normal(k_s, (N, CSKIP, 2 * H, 2 * W), jnp.float32)
    out = jax.block_until_ready(transition_up_forward(x, skip, w_t, bias))
    ref = jax.block_until_ready(reference_forward(x, skip, w_t, bias))
    assert out.shape == (N, COUT + CSKIP, 2 * H, 2 * W), out.shape
    assert jnp.allclose(out, ref, rtol=1e-4, atol=1e-4), float(jnp.abs(out - ref).max())

    # Case 2: odd center-crop offsets (exercises the general crop path)
    skip2 = jax.random.normal(k_s, (N, CSKIP, 2 * H - 1, 2 * W - 3), jnp.float32)
    out2 = jax.block_until_ready(transition_up_forward(x, skip2, w_t, bias))
    ref2 = jax.block_until_ready(reference_forward(x, skip2, w_t, bias))
    assert out2.shape == (N, COUT + CSKIP, 2 * H - 1, 2 * W - 3), out2.shape
    assert jnp.allclose(out2, ref2, rtol=1e-4, atol=1e-4), float(jnp.abs(out2 - ref2).max())

    print("KERNEL_OK")
</pallas_src>

<mosaic_0001>
module attributes {stable_mosaic.version = 11 : i64} {
  func.func @_transup_kernel(%arg0: i32, %arg1: i32, %arg2: memref<1x1x9x17x4xf32, #tpu.memory_space<vmem>>, %arg3: memref<16x20xf32, #tpu.memory_space<vmem>>, %arg4: memref<1x20xf32, #tpu.memory_space<vmem>>, %arg5: memref<1x1x128x20xf32, #tpu.memory_space<vmem>>) attributes {dimension_semantics = [#tpu.dimension_semantics<parallel>, #tpu.dimension_semantics<parallel>], iteration_bounds = array<i64: 2, 2>, scalar_prefetch = 0 : i64, scratch_operands = 0 : i64, tpu.core_type = #tpu.core_type<tc>, window_params = [{transform_indices = @transform_0, window_bounds = array<i64: 1, 1, 9, 17, 4>}, {pipeline_mode = #tpu.pipeline_mode<synchronous>, transform_indices = @transform_1, window_bounds = array<i64: 16, 20>}, {pipeline_mode = #tpu.pipeline_mode<synchronous>, transform_indices = @transform_2, window_bounds = array<i64: 1, 20>}, {transform_indices = @transform_3, window_bounds = array<i64: 1, 1, 128, 20>}]} {
    %c0 = arith.constant 0 : index
    %c0_0 = arith.constant 0 : index
    %c0_1 = arith.constant 0 : index
    %c0_2 = arith.constant 0 : index
    %c0_3 = arith.constant 0 : index
    %0 = vector.load %arg2[%c0, %c0_0, %c0_1, %c0_2, %c0_3] : memref<1x1x9x17x4xf32, #tpu.memory_space<vmem>>, vector<1x1x9x17x4xf32>
    %1 = vector.shape_cast %0 : vector<1x1x9x17x4xf32> to vector<9x17x4xf32>
    %2 = vector.extract_strided_slice %1 {offsets = [0, 0, 0], sizes = [8, 16, 4], strides = [1, 1, 1]} : vector<9x17x4xf32> to vector<8x16x4xf32>
    %3 = vector.extract_strided_slice %1 {offsets = [0, 1, 0], sizes = [8, 16, 4], strides = [1, 1, 1]} : vector<9x17x4xf32> to vector<8x16x4xf32>
    %4 = vector.extract_strided_slice %1 {offsets = [1, 0, 0], sizes = [8, 16, 4], strides = [1, 1, 1]} : vector<9x17x4xf32> to vector<8x16x4xf32>
    %5 = vector.extract_strided_slice %1 {offsets = [1, 1, 0], sizes = [8, 16, 4], strides = [1, 1, 1]} : vector<9x17x4xf32> to vector<8x16x4xf32>
    %6 = tpu.concatenate %2, %3, %4, %5 in 2 : vector<8x16x4xf32>, vector<8x16x4xf32>, vector<8x16x4xf32>, vector<8x16x4xf32> -> vector<8x16x16xf32>
    %7 = vector.shape_cast %6 : vector<8x16x16xf32> to vector<128x16xf32>
    %c0_4 = arith.constant 0 : index
    %c0_5 = arith.constant 0 : index
    %8 = vector.load %arg3[%c0_4, %c0_5] : memref<16x20xf32, #tpu.memory_space<vmem>>, vector<16x20xf32>
    %cst = arith.constant dense<0.000000e+00> : vector<128x20xf32>
    %9 = tpu.matmul %7, %8, %cst {dimension_numbers = #tpu.dot_dimension_numbers<[1], [0], [0], [1], [0, 0, 1, 1], [], []>} : vector<128x16xf32>, vector<16x20xf32>, vector<128x20xf32> -> vector<128x20xf32>
    %c0_6 = arith.constant 0 : index
    %c0_7 = arith.constant 0 : index
    %10 = vector.load %arg4[%c0_6, %c0_7] : memref<1x20xf32, #tpu.memory_space<vmem>>, vector<1x20xf32>
    %11 = vector.broadcast %10 : vector<1x20xf32> to vector<128x20xf32>
    %12 = arith.addf %9, %11 : vector<128x20xf32>
    %c0_8 = arith.constant 0 : index
    %c0_9 = arith.constant 0 : index
    %c0_10 = arith.constant 0 : index
    %c0_11 = arith.constant 0 : index
    %13 = vector.load %arg5[%c0_8, %c0_9, %c0_10, %c0_11] : memref<1x1x128x20xf32, #tpu.memory_space<vmem>>, vector<1x1x128x20xf32>
    %14 = vector.shape_cast %13 : vector<1x1x128x20xf32> to vector<128x20xf32>
    %15 = vector.shape_cast %12 : vector<128x20xf32> to vector<1x1x128x20xf32>
    tpu.vector_store %arg5[%c0_8, %c0_9, %c0_10, %c0_11], %15 {strides = array<i32>} : memref<1x1x128x20xf32, #tpu.memory_space<vmem>>, vector<1x1x128x20xf32>,
    return
  }
  func.func @transform_0(%arg0: i32, %arg1: i32) -> (i32, i32, i32, i32, i32) {
    %c0_i32 = arith.constant 0 : i32
    %c0_i32_0 = arith.constant 0 : i32
    %c0_i32_1 = arith.constant 0 : i32
    %c0_i32_2 = arith.constant 0 : i32
    return %arg0, %arg1, %c0_i32, %c0_i32_0, %c0_i32_1 : i32, i32, i32, i32, i32
  }
  func.func @transform_1(%arg0: i32, %arg1: i32) -> (i32, i32) {
    %c0_i32 = arith.constant 0 : i32
    %c0_i32_0 = arith.constant 0 : i32
    %c0_i32_1 = arith.constant 0 : i32
    return %c0_i32, %c0_i32_0 : i32, i32
  }
  func.func @transform_2(%arg0: i32, %arg1: i32) -> (i32, i32) {
    %c0_i32 = arith.constant 0 : i32
    %c0_i32_0 = arith.constant 0 : i32
    %c0_i32_1 = arith.constant 0 : i32
    return %c0_i32, %c0_i32_0 : i32, i32
  }
  func.func @transform_3(%arg0: i32, %arg1: i32) -> (i32, i32, i32, i32) {
    %c0_i32 = arith.constant 0 : i32
    %c0_i32_0 = arith.constant 0 : i32
    %c0_i32_1 = arith.constant 0 : i32
    return %arg0, %arg1, %c0_i32, %c0_i32_0 : i32, i32, i32, i32
  }
}

</mosaic_0001>

<llo_original>
// kernel: tpu_custom_call.1
$region0: #{tpu_custom_call.1}
  #allocation0 [shape = 'u32[]', space=smem, size = 0x4, offset = 0x4, fixed_abs, tag = 'smem constant byte address 0x4 - core index']
  #allocation1 [shape = 'u32[72,128]{1,0:T(1,128)}', space=vmem, size = 0x9000, scoped, tag = 'internal scratch']
  %s0 = inlined_call_operand.vmem [shape: f32[2,2,9,17,4], index: 0, kind: input, shape index: {}]
  %s1 = inlined_call_operand.vmem [shape: f32[16,20], index: 1, kind: input, shape index: {}]
  %s2 = inlined_call_operand.vmem [shape: f32[1,20], index: 2, kind: input, shape index: {}]
  %s3 = inlined_call_operand.vmem [shape: f32[2,2,128,20], index: 3, kind: output, shape index: {}]
  %s4 = sld [smem:[#allocation0]]
  $region45: #{tpu_custom_call.1} parent=0
    _
  %s6 = ssub.s32 1, %s4
  %s7 = scalar_select 0, %s6, %s4
  loop: start=0, step=1, limit=6
  $region2: #{tpu_custom_call.1} parent=0 // loop_pre_header
    _
  $region3: #{tpu_custom_call.1} parent=0 // loop_header
    %s9 = sphi 0, %s13
    %p10 = scmp.ge.s32.totalorder %s9, 6
    %s16 = sphi 0, %s28
    %s17 = sphi 0, %s24
    %s18 = sphi 0, %s16
    %s19 = sphi 0, %s17
    %s20 = sphi 0, %s18
    %s21 = sphi 0, %s19
    %s33 = sphi 0, %s35
    %s36 = sphi 0, %s33
    %s37 = sphi 0, %s36
    %s53 = sphi 0, %s37
    %s57 = sphi 0, %s57
    %s59 = sphi 0, %s57
    %s60 = sphi 0, %s59
    %s74 = sphi 0, %s60
    %s78 = sphi 0, %s78
    %s80 = sphi 0, %s78
    %s81 = sphi 0, %s80
    %s95 = sphi 0, %s81
    %s103 = sphi 0, %s105
    %s106 = sphi 0, %s103
    %s107 = sphi 0, %s106
    %s123 = sphi 0, %s107
  $region4: #{tpu_custom_call.1} parent=0 // loop_header_branch
    %12 = sbr.rel (%p10) target = $region8
  $region5: #{tpu_custom_call.1} parent=0 // loop_body
    %s14 = ssub.s32 %s9, 1
    %s15 = ssub.s32 %s9, 2
    %s22 = sadd.s32 1, %s17
    %p23 = scmp.ge.s32.totalorder %s22, 2
    %s24 = scalar_select %p23, 0, %s22
    %s25 = sadd.s32 1, %s16
    %s26 = scalar_select %p23, %s25, %s16
    %p27 = scmp.ge.s32.totalorder %s26, 2
    %s28 = scalar_select %p27, 0, %s26
    %s29 = ssub.s32 %s16, %s28
    %s30 = ssub.s32 %s17, %s24
    %s31 = sor.u32 %s29, %s30
    %p32 = scmp.eq.s32.totalorder %s31, 0
    %s34 = sadd.s32 %s33, 1
    %s35 = scalar_select %p32, %s33, %s34
    %p38 = pneg %p32
    %p39 = scmp.eq.s32.totalorder %s9, 3
    %p40 = por %p38, %p39
    %p41 = scmp.ne.s32.totalorder %s33, %s36
    %p42 = scmp.eq.s32.totalorder %s9, 0
    %p43 = por %p41, %p42
    %p44 = scmp.ne.s32.totalorder %s33, %s36
    %p45 = scmp.eq.s32.totalorder %s14, 3
    %p46 = por %p44, %p45
    %p47 = scmp.ne.s32.totalorder %s36, %s37
    %p48 = scmp.eq.s32.totalorder %s14, 0
    %p49 = por %p47, %p48
    %p50 = scmp.ne.s32.totalorder %s36, %s37
    %p51 = scmp.eq.s32.totalorder %s15, 3
    %p52 = por %p50, %p51
    %p54 = scmp.ne.s32.totalorder %s37, %s53
    %p55 = scmp.eq.s32.totalorder %s15, 0
    %p56 = por %p54, %p55
    %s58 = sadd.s32 %s57, 1
    %p61 = scmp.eq.s32.totalorder %s9, 3
    %p62 = scmp.ne.s32.totalorder %s57, %s59
    %p63 = scmp.eq.s32.totalorder %s9, 0
    %p64 = por %p62, %p63
    %p65 = scmp.ne.s32.totalorder %s57, %s59
    %p66 = scmp.eq.s32.totalorder %s14, 3
    %p67 = por %p65, %p66
    %p68 = scmp.ne.s32.totalorder %s59, %s60
    %p69 = scmp.eq.s32.totalorder %s14, 0
    %p70 = por %p68, %p69
    %p71 = scmp.ne.s32.totalorder %s59, %s60
    %p72 = scmp.eq.s32.totalorder %s15, 3
    %p73 = por %p71, %p72
    %p75 = scmp.ne.s32.totalorder %s60, %s74
    %p76 = scmp.eq.s32.totalorder %s15, 0
    %p77 = por %p75, %p76
    %s79 = sadd.s32 %s78, 1
    %p82 = scmp.eq.s32.totalorder %s9, 3
    %p83 = scmp.ne.s32.totalorder %s78, %s80
    %p84 = scmp.eq.s32.totalorder %s9, 0
    %p85 = por %p83, %p84
    %p86 = scmp.ne.s32.totalorder %s78, %s80
    %p87 = scmp.eq.s32.totalorder %s14, 3
    %p88 = por %p86, %p87
    %p89 = scmp.ne.s32.totalorder %s80, %s81
    %p90 = scmp.eq.s32.totalorder %s14, 0
    %p91 = por %p89, %p90
    %p92 = scmp.ne.s32.totalorder %s80, %s81
    %p93 = scmp.eq.s32.totalorder %s15, 3
    %p94 = por %p92, %p93
    %p96 = scmp.ne.s32.totalorder %s81, %s95
    %p97 = scmp.eq.s32.totalorder %s15, 0
    %p98 = por %p96, %p97
    %s99 = ssub.s32 %s16, %s28
    %s100 = ssub.s32 %s17, %s24
    %s101 = sor.u32 %s99, %s100
    %p102 = scmp.eq.s32.totalorder %s101, 0
    %s104 = sadd.s32 %s103, 1
    %s105 = scalar_select %p102, %s103, %s104
    %p108 = pneg %p102
    %p109 = scmp.eq.s32.totalorder %s9, 3
    %p110 = por %p108, %p109
    %p111 = scmp.ne.s32.totalorder %s103, %s106
    %p112 = scmp.eq.s32.totalorder %s9, 0
    %p113 = por %p111, %p112
    %p114 = scmp.ne.s32.totalorder %s103, %s106
    %p115 = scmp.eq.s32.totalorder %s14, 3
    %p116 = por %p114, %p115
    %p117 = scmp.ne.s32.totalorder %s106, %s107
    %p118 = scmp.eq.s32.totalorder %s14, 0
    %p119 = por %p117, %p118
    %p120 = scmp.ne.s32.totalorder %s106, %s107
    %p121 = scmp.eq.s32.totalorder %s15, 3
    %p122 = por %p120, %p121
    %p124 = scmp.ne.s32.totalorder %s107, %s123
    %p125 = scmp.eq.s32.totalorder %s15, 0
    %p126 = por %p124, %p125
    %p127 = scmp.le.s32.totalorder 1, %s9
    %p128 = scmp.lt.s32.totalorder %s9, 5
    %p129 = pnand %p127, %p128
    %p130 = pneg %p129
    // Predicated region
    $region9: #{tpu_custom_call.1} parent=5 // pred_check
      _
    $region10: #{tpu_custom_call.1} parent=5 // pred_check_branch
      %132 = sbr.rel (%p129) target = $region12
    $region11: #{tpu_custom_call.1} parent=5 // pred_region
      %s133 = ssub.s32 %s9, 1
      // Predicated region
      $region13: #{tpu_custom_call.1} parent=11 // pred_check
        %p134 = pneg %p70
      $region14: #{tpu_custom_call.1} parent=11 // pred_check_branch
        %136 = sbr.rel (%p134) target = $region16
      $region15: #{tpu_custom_call.1} parent=11 // pred_region
        _
      $region16: #{tpu_custom_call.1} parent=11 // pred_fallthru
        _
      // Predicated region
      $region17: #{tpu_custom_call.1} parent=11 // pred_check
        %p137 = pneg %p91
      $region18: #{tpu_custom_call.1} parent=11 // pred_check_branch
        %139 = sbr.rel (%p137) target = $region20
      $region19: #{tpu_custom_call.1} parent=11 // pred_region
        _
      $region20: #{tpu_custom_call.1} parent=11 // pred_fallthru
        _
    $region12: #{tpu_custom_call.1} parent=5 // pred_fallthru
      _
    %p140 = scmp.lt.s32.totalorder %s9, 4
    // Predicated region
    $region21: #{tpu_custom_call.1} parent=5 // pred_check
      %p141 = pneg %p140
    $region22: #{tpu_custom_call.1} parent=5 // pred_check_branch
      %143 = sbr.rel (%p141) target = $region24
    $region23: #{tpu_custom_call.1} parent=5 // pred_region
      // Predicated region
      $region25: #{tpu_custom_call.1} parent=23 // pred_check
        %p144 = pneg %p43
      $region26: #{tpu_custom_call.1} parent=23 // pred_check_branch
        %146 = sbr.rel (%p144) target = $region28
      $region27: #{tpu_custom_call.1} parent=23 // pred_region
        %p147 = scmp.lt.s32.totalorder %s16, 1
        %s148 = scalar_select %p147, %s16, 1
        %p149 = scmp.lt.s32.totalorder %s17, 1
        %s150 = scalar_select %p149, %s17, 1
        %s151 = smul.addr %s150, 27
        %s152 = smul.addr %s148, 54
        %s153 = sadd.s32 %s151, %s152
        %s154 = smul.addr %s153, 8
        %s155 = scalar_lea.vmem %s0, %s154
      $region28: #{tpu_custom_call.1} parent=23 // pred_fallthru
        _
    $region24: #{tpu_custom_call.1} parent=5 // pred_fallthru
      _
    %p156 = scmp.le.s32.totalorder 1, %s9
    %p157 = scmp.lt.s32.totalorder %s9, 5
    %p158 = pnand %p156, %p157
    %p159 = pneg %p158
    // Predicated region
    $region29: #{tpu_custom_call.1} parent=5 // pred_check
      _
    $region30: #{tpu_custom_call.1} parent=5 // pred_check_branch
      %161 = sbr.rel (%p158) target = $region32
    $region31: #{tpu_custom_call.1} parent=5 // pred_region
      %s162 = ssub.s32 %s9, 1
      %p163 = scmp.lt.s32.totalorder %s18, 1
      %s164 = scalar_select %p163, %s18, 1
      %p165 = scmp.lt.s32.totalorder %s19, 1
      %s166 = scalar_select %p165, %s19, 1
      %s167 = smul.addr %s166, 27
      %s168 = smul.addr %s164, 54
      %s169 = sadd.s32 %s167, %s168
      %s170 = smul.addr %s169, 8
      %s171 = scalar_lea.vmem %s0, %s170
      %p172 = pneg %p49
      %p173 = pneg %p46
      %p174 = pneg %p70
      %p175 = pneg %p67
      %p176 = pneg %p91
      %p177 = pneg %p88
      %p178 = pneg %p119
      %p179 = pneg %p116
      %p180 = scmp.lt.s32.totalorder %s18, 1
      %s181 = scalar_select %p180, %s18, 1
      %p182 = scmp.lt.s32.totalorder %s19, 1
      %s183 = scalar_select %p182, %s19, 1
      %s184 = smul.addr %s183, 16
      %s185 = smul.addr %s181, 32
      %s186 = sadd.s32 %s184, %s185
      %s187 = smul.addr %s186, 8
      %s188 = scalar_lea.vmem %s3, %s187
      %p189 = scmp.lt.s32.totalorder %s18, 1
      %s190 = scalar_select %p189, %s18, 1
      %p191 = scmp.lt.s32.totalorder %s19, 1
      %s192 = scalar_select %p191, %s19, 1
      %s193 = smul.addr %s192, 27
      %s194 = smul.addr %s190, 54
      %s195 = sadd.s32 %s193, %s194
      %s196 = smul.addr %s195, 8
      %s197 = scalar_lea.vmem %s0, %s196
      %p198 = scmp.lt.s32.totalorder %s18, 1
      %s199 = scalar_select %p198, %s18, 1
      %p200 = scmp.lt.s32.totalorder %s19, 1
      %s201 = scalar_select %p200, %s19, 1
      %s202 = smul.addr %s201, 16
      %s203 = smul.addr %s199, 32
      %s204 = sadd.s32 %s202, %s203
      %s205 = smul.addr %s204, 8
      %s206 = scalar_lea.vmem %s3, %s205
      %v207 = vld [vmem:[%s197] sm:$0xff]
      %v208 = vld [vmem:[%s197 + $0x8] sm:$0xff]
      %v209 = vld [vmem:[%s197 + $0x10] sm:$0x1]
      %v210 = vld [vmem:[%s197 + $0x18] sm:$0xff]
      %v211 = vld [vmem:[%s197 + $0x20] sm:$0xff]
      %v212 = vld [vmem:[%s197 + $0x28] sm:$0x1]
      %v213 = vld [vmem:[%s197 + $0x30] sm:$0xff]
      %v214 = vld [vmem:[%s197 + $0x38] sm:$0xff]
      %v215 = vld [vmem:[%s197 + $0x40] sm:$0x1]
      %v216 = vld [vmem:[%s197 + $0x48] sm:$0xff]
      %v217 = vld [vmem:[%s197 + $0x50] sm:$0xff]
      %v218 = vld [vmem:[%s197 + $0x58] sm:$0x1]
      %v219 = vld [vmem:[%s197 + $0x60] sm:$0xff]
      %v220 = vld [vmem:[%s197 + $0x68] sm:$0xff]
      %v221 = vld [vmem:[%s197 + $0x70] sm:$0x1]
      %v222 = vld [vmem:[%s197 + $0x78] sm:$0xff]
      %v223 = vld [vmem:[%s197 + $0x80] sm:$0xff]
      %v224 = vld [vmem:[%s197 + $0x88] sm:$0x1]
      %v225 = vld [vmem:[%s197 + $0x90] sm:$0xff]
      %v226 = vld [vmem:[%s197 + $0x98] sm:$0xff]
      %v227 = vld [vmem:[%s197 + $0xa0] sm:$0x1]
      %v228 = vld [vmem:[%s197 + $0xa8] sm:$0xff]
      %v229 = vld [vmem:[%s197 + $0xb0] sm:$0xff]
      %v230 = vld [vmem:[%s197 + $0xb8] sm:$0x1]
      %v231 = vld [vmem:[%s197 + $0xc0] sm:$0xff]
      %v232 = vld [vmem:[%s197 + $0xc8] sm:$0xff]
      %v233 = vld [vmem:[%s197 + $0xd0] sm:$0x1]
      %vm258 = vcmask 1046528
      %v259 = vrot.slane %v207, 1
      %v260 = vrot.slane %v208, 1
      %v261 = vsel %vm258, %v259, %v260
      %v262 = vrot.slane %v209, 1
      %v263 = vsel %vm258, %v260, %v262
      %v264 = vrot.slane %v210, 1
      %v265 = vrot.slane %v211, 1
      %v266 = vsel %vm258, %v264, %v265
      %v267 = vrot.slane %v212, 1
      %v268 = vsel %vm258, %v265, %v267
      %v269 = vrot.slane %v213, 1
      %v270 = vrot.slane %v214, 1
      %v271 = vsel %vm258, %v269, %v270
      %v272 = vrot.slane %v215, 1
      %v273 = vsel %vm258, %v270, %v272
      %v274 = vrot.slane %v216, 1
      %v275 = vrot.slane %v217, 1
      %v276 = vsel %vm258, %v274, %v275
      %v277 = vrot.slane %v218, 1
      %v278 = vsel %vm258, %v275, %v277
      %v279 = vrot.slane %v219, 1
      %v280 = vrot.slane %v220, 1
      %v281 = vsel %vm258, %v279, %v280
      %v282 = vrot.slane %v221, 1
      %v283 = vsel %vm258, %v280, %v282
      %v284 = vrot.slane %v222, 1
      %v285 = vrot.slane %v223, 1
      %v286 = vsel %vm258, %v284, %v285
      %v287 = vrot.slane %v224, 1
      %v288 = vsel %vm258, %v285, %v287
      %v289 = vrot.slane %v225, 1
      %v290 = vrot.slane %v226, 1
      %v291 = vsel %vm258, %v289, %v290
      %v292 = vrot.slane %v227, 1
      %v293 = vsel %vm258, %v290, %v292
      %v294 = vrot.slane %v228, 1
      %v295 = vrot.slane %v229, 1
      %v296 = vsel %vm258, %v294, %v295
      %v297 = vrot.slane %v230, 1
      %v298 = vsel %vm258, %v295, %v297
      %299 = vrot.lane.b32.xlu0 %v261, 4
      %v300 = vpop.permute.xlu0 %299
      %301 = vrot.lane.b32.xlu0 %v263, 4
      %v302 = vpop.permute.xlu0 %301
      %303 = vrot.lane.b32.xlu0 %v266, 4
      %v304 = vpop.permute.xlu0 %303
      %305 = vrot.lane.b32.xlu0 %v268, 4
      %v306 = vpop.permute.xlu0 %305
      %307 = vrot.lane.b32.xlu0 %v271, 4
      %v308 = vpop.permute.xlu0 %307
      %309 = vrot.lane.b32.xlu0 %v273, 4
      %v310 = vpop.permute.xlu0 %309
      %311 = vrot.lane.b32.xlu0 %v276, 4
      %v312 = vpop.permute.xlu0 %311
      %313 = vrot.lane.b32.xlu0 %v278, 4
      %v314 = vpop.permute.xlu0 %313
      %315 = vrot.lane.b32.xlu0 %v281, 4
      %v316 = vpop.permute.xlu0 %315
      %317 = vrot.lane.b32.xlu0 %v283, 4
      %v318 = vpop.permute.xlu0 %317
      %319 = vrot.lane.b32.xlu0 %v286, 4
      %v320 = vpop.permute.xlu0 %319
      %321 = vrot.lane.b32.xlu0 %v288, 4
      %v322 = vpop.permute.xlu0 %321
      %323 = vrot.lane.b32.xlu0 %v291, 4
      %v324 = vpop.permute.xlu0 %323
      %325 = vrot.lane.b32.xlu0 %v293, 4
      %v326 = vpop.permute.xlu0 %325
      %327 = vrot.lane.b32.xlu0 %v296, 4
      %v328 = vpop.permute.xlu0 %327
      %329 = vrot.lane.b32.xlu0 %v298, 4
      %v330 = vpop.permute.xlu0 %329
      %349 = vrot.lane.b32.xlu0 %v210, 8
      %v350 = vpop.permute.xlu0 %349
      %351 = vrot.lane.b32.xlu0 %v211, 8
      %v352 = vpop.permute.xlu0 %351
      %353 = vrot.lane.b32.xlu0 %v213, 8
      %v354 = vpop.permute.xlu0 %353
      %355 = vrot.lane.b32.xlu0 %v214, 8
      %v356 = vpop.permute.xlu0 %355
      %357 = vrot.lane.b32.xlu0 %v216, 8
      %v358 = vpop.permute.xlu0 %357
      %359 = vrot.lane.b32.xlu0 %v217, 8
      %v360 = vpop.permute.xlu0 %359
      %361 = vrot.lane.b32.xlu0 %v219, 8
      %v362 = vpop.permute.xlu0 %361
      %363 = vrot.lane.b32.xlu0 %v220, 8
      %v364 = vpop.permute.xlu0 %363
      %365 = vrot.lane.b32.xlu0 %v222, 8
      %v366 = vpop.permute.xlu0 %365
      %367 = vrot.lane.b32.xlu0 %v223, 8
      %v368 = vpop.permute.xlu0 %367
      %369 = vrot.lane.b32.xlu0 %v225, 8
      %v370 = vpop.permute.xlu0 %369
      %371 = vrot.lane.b32.xlu0 %v226, 8
      %v372 = vpop.permute.xlu0 %371
      %373 = vrot.lane.b32.xlu0 %v228, 8
      %v374 = vpop.permute.xlu0 %373
      %375 = vrot.lane.b32.xlu0 %v229, 8
      %v376 = vpop.permute.xlu0 %375
      %377 = vrot.lane.b32.xlu0 %v231, 8
      %v378 = vpop.permute.xlu0 %377
      %379 = vrot.lane.b32.xlu0 %v232, 8
      %v380 = vpop.permute.xlu0 %379
      %v398 = vrot.slane %v231, 1
      %v399 = vrot.slane %v232, 1
      %v400 = vsel %vm258, %v398, %v399
      %v401 = vrot.slane %v233, 1
      %v402 = vsel %vm258, %v399, %v401
      %403 = vrot.lane.b32.xlu0 %v266, 12
      %v404 = vpop.permute.xlu0 %403
      %405 = vrot.lane.b32.xlu0 %v268, 12
      %v406 = vpop.permute.xlu0 %405
      %407 = vrot.lane.b32.xlu0 %v271, 12
      %v408 = vpop.permute.xlu0 %407
      %409 = vrot.lane.b32.xlu0 %v273, 12
      %v410 = vpop.permute.xlu0 %409
      %411 = vrot.lane.b32.xlu0 %v276, 12
      %v412 = vpop.permute.xlu0 %411
      %413 = vrot.lane.b32.xlu0 %v278, 12
      %v414 = vpop.permute.xlu0 %413
      %415 = vrot.lane.b32.xlu0 %v281, 12
      %v416 = vpop.permute.xlu0 %415
      %417 = vrot.lane.b32.xlu0 %v283, 12
      %v418 = vpop.permute.xlu0 %417
      %419 = vrot.lane.b32.xlu0 %v286, 12
      %v420 = vpop.permute.xlu0 %419
      %421 = vrot.lane.b32.xlu0 %v288, 12
      %v422 = vpop.permute.xlu0 %421
      %423 = vrot.lane.b32.xlu0 %v291, 12
      %v424 = vpop.permute.xlu0 %423
      %425 = vrot.lane.b32.xlu0 %v293, 12
      %v426 = vpop.permute.xlu0 %425
      %427 = vrot.lane.b32.xlu0 %v296, 12
      %v428 = vpop.permute.xlu0 %427
      %429 = vrot.lane.b32.xlu0 %v298, 12
      %v430 = vpop.permute.xlu0 %429
      %431 = vrot.lane.b32.xlu0 %v400, 12
      %v432 = vpop.permute.xlu0 %431
      %433 = vrot.lane.b32.xlu0 %v402, 12
      %v434 = vpop.permute.xlu0 %433
      %vm451 = vcmask 31744
      %v452 = vsel %vm451, %v207, %v300
      %v453 = vsel %vm451, %v208, %v302
      %v454 = vsel %vm451, %v210, %v304
      %v455 = vsel %vm451, %v211, %v306
      %v456 = vsel %vm451, %v213, %v308
      %v457 = vsel %vm451, %v214, %v310
      %v458 = vsel %vm451, %v216, %v312
      %v459 = vsel %vm451, %v217, %v314
      %v460 = vsel %vm451, %v219, %v316
      %v461 = vsel %vm451, %v220, %v318
      %v462 = vsel %vm451, %v222, %v320
      %v463 = vsel %vm451, %v223, %v322
      %v464 = vsel %vm451, %v225, %v324
      %v465 = vsel %vm451, %v226, %v326
      %v466 = vsel %vm451, %v228, %v328
      %v467 = vsel %vm451, %v229, %v330
      %vm468 = vcmask 64512
      %v469 = vsel %vm468, %v452, %v350
      %v470 = vsel %vm468, %v453, %v352
      %v471 = vsel %vm468, %v454, %v354
      %v472 = vsel %vm468, %v455, %v356
      %v473 = vsel %vm468, %v456, %v358
      %v474 = vsel %vm468, %v457, %v360
      %v475 = vsel %vm468, %v458, %v362
      %v476 = vsel %vm468, %v459, %v364
      %v477 = vsel %vm468, %v460, %v366
      %v478 = vsel %vm468, %v461, %v368
      %v479 = vsel %vm468, %v462, %v370
      %v480 = vsel %vm468, %v463, %v372
      %v481 = vsel %vm468, %v464, %v374
      %v482 = vsel %vm468, %v465, %v376
      %v483 = vsel %vm468, %v466, %v378
      %v484 = vsel %vm468, %v467, %v380
      %vm485 = vcmask 97280
      %v486 = vsel %vm485, %v469, %v404
      %v487 = vsel %vm485, %v470, %v406
      %v488 = vsel %vm485, %v471, %v408
      %v489 = vsel %vm485, %v472, %v410
      %v490 = vsel %vm485, %v473, %v412
      %v491 = vsel %vm485, %v474, %v414
      %v492 = vsel %vm485, %v475, %v416
      %v493 = vsel %vm485, %v476, %v418
      %v494 = vsel %vm485, %v477, %v420
      %v495 = vsel %vm485, %v478, %v422
      %v496 = vsel %vm485, %v479, %v424
      %v497 = vsel %vm485, %v480, %v426
      %v498 = vsel %vm485, %v481, %v428
      %v499 = vsel %vm485, %v482, %v430
      %v500 = vsel %vm485, %v483, %v432
      %v501 = vsel %vm485, %v484, %v434
      %v502 = vld [vmem:[%s1] sm:$0xff]
      %v503 = vld [vmem:[%s1 + $0x8] sm:$0xff]
      %v504 = vld [vmem:[%s2] sm:$0x1]
      %v506 = vperm.slane %v504, 0
      %vm508 = vcmask 130048
      %v510 = vsel %vm508, %v486, 0
      %v513 = vsel %vm508, %v487, 0
      %v516 = vsel %vm508, %v488, 0
      %v519 = vsel %vm508, %v489, 0
      %v522 = vsel %vm508, %v490, 0
      %v525 = vsel %vm508, %v491, 0
      %v528 = vsel %vm508, %v492, 0
      %v531 = vsel %vm508, %v493, 0
      %v534 = vsel %vm508, %v494, 0
      %v537 = vsel %vm508, %v495, 0
      %v540 = vsel %vm508, %v496, 0
      %v543 = vsel %vm508, %v497, 0
      %v546 = vsel %vm508, %v498, 0
      %v549 = vsel %vm508, %v499, 0
      %v552 = vsel %vm508, %v500, 0
      %v555 = vsel %vm508, %v501, 0
      %557 = vmatpush.msra.mxu0 0.0
      %558 = vmatpush.msra.mxu0 0.0
      %559 = vmatpush.msra.mxu0 0.0
      %560 = vmatpush.msra.mxu0 0.0
      %561 = vmatpush.msra.mxu0 0.0
      %562 = vmatpush.msra.mxu0 0.0
      %563 = vmatpush.msra.mxu0 0.0
      %564 = vmatpush.msra.mxu0 0.0
      %565 = vmatpush.msra.mxu0 0.0
      %566 = vmatpush.msra.mxu0 0.0
      %567 = vmatpush.msra.mxu0 0.0
      %568 = vmatpush.msra.mxu0 0.0
      %569 = vmatpush.msra.mxu0 0.0
      %570 = vmatpush.msra.mxu0 0.0
      %571 = vmatpush.msra.mxu0 %v503
      %572 = vmatpush.msra.mxu0 %v502
      %573 = vmatmul.f32.gmra.mxu0 %v510
      %v574 = vpop.f32.mrf.mxu0
      %v575 = vadd.f32 %v506, %v574
      %576 = vmatmul.f32.gmra.mxu0 %v513
      %v577 = vpop.f32.mrf.mxu0
      %v578 = vadd.f32 %v506, %v577
      %579 = vmatmul.f32.gmra.mxu0 %v516
      %v580 = vpop.f32.mrf.mxu0
      %v581 = vadd.f32 %v506, %v580
      %582 = vmatmul.f32.gmra.mxu0 %v519
      %v583 = vpop.f32.mrf.mxu0
      %v584 = vadd.f32 %v506, %v583
      %585 = vmatmul.f32.gmra.mxu0 %v522
      %v586 = vpop.f32.mrf.mxu0
      %v587 = vadd.f32 %v506, %v586
      %588 = vmatmul.f32.gmra.mxu0 %v525
      %v589 = vpop.f32.mrf.mxu0
      %v590 = vadd.f32 %v506, %v589
      %591 = vmatmul.f32.gmra.mxu0 %v528
      %v592 = vpop.f32.mrf.mxu0
      %v593 = vadd.f32 %v506, %v592
      %594 = vmatmul.f32.gmra.mxu0 %v531
      %v595 = vpop.f32.mrf.mxu0
      %v596 = vadd.f32 %v506, %v595
      %597 = vmatmul.f32.gmra.mxu0 %v534
      %v598 = vpop.f32.mrf.mxu0
      %v599 = vadd.f32 %v506, %v598
      %600 = vmatmul.f32.gmra.mxu0 %v537
      %v601 = vpop.f32.mrf.mxu0
      %v602 = vadd.f32 %v506, %v601
      %603 = vmatmul.f32.gmra.mxu0 %v540
      %v604 = vpop.f32.mrf.mxu0
      %v605 = vadd.f32 %v506, %v604
      %606 = vmatmul.f32.gmra.mxu0 %v543
      %v607 = vpop.f32.mrf.mxu0
      %v608 = vadd.f32 %v506, %v607
      %609 = vmatmul.f32.gmra.mxu0 %v546
      %v610 = vpop.f32.mrf.mxu0
      %v611 = vadd.f32 %v506, %v610
      %612 = vmatmul.f32.gmra.mxu0 %v549
      %v613 = vpop.f32.mrf.mxu0
      %v614 = vadd.f32 %v506, %v613
      %615 = vmatmul.f32.gmra.mxu0 %v552
      %v616 = vpop.f32.mrf.mxu0
      %v617 = vadd.f32 %v506, %v616
      %618 = vmatmul.f32.gmra.mxu0 %v555
      %v619 = vpop.f32.mrf.mxu0
      %v620 = vadd.f32 %v506, %v619
      %621 = vdwg.mxu0
      %vm622 = vcmask 162816
      %623 = vst.msk [vmem:[%s206] sm:$0xff] %vm622, %v575
      %624 = vst.msk [vmem:[%s206 + $0x8] sm:$0xff] %vm622, %v578
      %625 = vst.msk [vmem:[%s206 + $0x10] sm:$0xff] %vm622, %v581
      %626 = vst.msk [vmem:[%s206 + $0x18] sm:$0xff] %vm622, %v584
      %627 = vst.msk [vmem:[%s206 + $0x20] sm:$0xff] %vm622, %v587
      %628 = vst.msk [vmem:[%s206 + $0x28] sm:$0xff] %vm622, %v590
      %629 = vst.msk [vmem:[%s206 + $0x30] sm:$0xff] %vm622, %v593
      %630 = vst.msk [vmem:[%s206 + $0x38] sm:$0xff] %vm622, %v596
      %631 = vst.msk [vmem:[%s206 + $0x40] sm:$0xff] %vm622, %v599
      %632 = vst.msk [vmem:[%s206 + $0x48] sm:$0xff] %vm622, %v602
      %633 = vst.msk [vmem:[%s206 + $0x50] sm:$0xff] %vm622, %v605
      %634 = vst.msk [vmem:[%s206 + $0x58] sm:$0xff] %vm622, %v608
      %635 = vst.msk [vmem:[%s206 + $0x60] sm:$0xff] %vm622, %v611
      %636 = vst.msk [vmem:[%s206 + $0x68] sm:$0xff] %vm622, %v614
      %637 = vst.msk [vmem:[%s206 + $0x70] sm:$0xff] %vm622, %v617
      %638 = vst.msk [vmem:[%s206 + $0x78] sm:$0xff] %vm622, %v620
      %p639 = scmp.lt.s32.totalorder %s18, 1
      %s640 = scalar_select %p639, %s18, 1
      %p641 = scmp.lt.s32.totalorder %s19, 1
      %s642 = scalar_select %p641, %s19, 1
      %s643 = smul.addr %s642, 16
      %s644 = smul.addr %s640, 32
      %s645 = sadd.s32 %s643, %s644
      %s646 = smul.addr %s645, 8
      %s647 = scalar_lea.vmem %s3, %s646
      // Predicated region
      $region33: #{tpu_custom_call.1} parent=31 // pred_check
        %p648 = pneg %p116
      $region34: #{tpu_custom_call.1} parent=31 // pred_check_branch
        %650 = sbr.rel (%p648) target = $region36
      $region35: #{tpu_custom_call.1} parent=31 // pred_region
        _
      $region36: #{tpu_custom_call.1} parent=31 // pred_fallthru
        _
    $region32: #{tpu_custom_call.1} parent=5 // pred_fallthru
      _
    %p651 = scmp.le.s32.totalorder 2, %s9
    // Predicated region
    $region37: #{tpu_custom_call.1} parent=5 // pred_check
      %p652 = pneg %p651
    $region38: #{tpu_custom_call.1} parent=5 // pred_check_branch
      %654 = sbr.rel (%p652) target = $region40
    $region39: #{tpu_custom_call.1} parent=5 // pred_region
      %s655 = ssub.s32 %s9, 2
      // Predicated region
      $region41: #{tpu_custom_call.1} parent=39 // pred_check
        %p656 = pneg %p122
      $region42: #{tpu_custom_call.1} parent=39 // pred_check_branch
        %658 = sbr.rel (%p656) target = $region44
      $region43: #{tpu_custom_call.1} parent=39 // pred_region
        %p659 = scmp.lt.s32.totalorder %s20, 1
        %s660 = scalar_select %p659, %s20, 1
        %p661 = scmp.lt.s32.totalorder %s21, 1
        %s662 = scalar_select %p661, %s21, 1
        %s663 = smul.addr %s662, 16
        %s664 = smul.addr %s660, 32
        %s665 = sadd.s32 %s663, %s664
        %s666 = smul.addr %s665, 8
        %s667 = scalar_lea.vmem %s3, %s666
      $region44: #{tpu_custom_call.1} parent=39 // pred_fallthru
        _
    $region40: #{tpu_custom_call.1} parent=5 // pred_fallthru
      _
  $region6: #{tpu_custom_call.1} parent=0 // loop_footer
    %s13 = sadd.s32 1, %s9
  $region7: #{tpu_custom_call.1} parent=0 // loop_footer_branch
    %8 = sbr.rel target = $region3
  $region8: #{tpu_custom_call.1} parent=0 // loop_exit
    _

</llo_original>
